<compile_context>
chip_gen: v6e
topology: v6e:2x2x1
jax: 0.10.0
libtpu: 0.0.40
codegen_flags: <defaults>
</compile_context>

<pallas_src>
import jax
import jax.numpy as jnp
from jax.experimental import pallas as pl
from jax.experimental.pallas import tpu as pltpu


def word_attention_kernel(x_ref, mask_ref, w1_ref, b1_ref, w2t_ref, out_ref):
    # x_ref:    (G, T, D)   G sentences of token embeddings (T % 8 == 0)
    # mask_ref: (G, T, 1)   token mask (float, 1.0 = keep)
    # w1_ref:   (D, P), b1_ref: (1, P)
    # w2t_ref:  (1, P)      att_scorer weight, pre-transposed
    # out_ref:  (G, D)
    G, T, D = x_ref.shape

    x = x_ref[...]                                   # (G, T, D)
    xf = x.reshape(G * T, D)                         # layout-free (T % 8 == 0, f32)

    # att_proj: tanh(x @ W1 + b1) — the single MXU matmul, M = G*T rows.
    proj = jnp.tanh(
        jnp.dot(xf, w1_ref[...], preferred_element_type=jnp.float32)
        + b1_ref[...]
    )                                                # (G*T, P)

    # att_scorer as VPU multiply + lane reduction (avoids an N=1 MXU matmul).
    # b2 is a constant shift under softmax -> dropped.
    scores = jnp.sum(proj * w2t_ref[...], axis=-1, keepdims=True)  # (G*T, 1)
    s = scores.reshape(G, T, 1)                      # layout-free regroup

    # Masked softmax over the token (sublane) axis; fully-masked sentences
    # produce all-zero attention (matches masked_fill(-inf)+softmax+nan->0).
    mask = mask_ref[...]                             # (G, T, 1)
    neg_inf = jnp.float32(-jnp.inf)
    s_masked = jnp.where(mask > 0, s, neg_inf)
    m = jnp.max(s_masked, axis=1, keepdims=True)     # (G, 1, 1)
    safe_m = jnp.where(jnp.isfinite(m), m, jnp.float32(0.0))
    e = jnp.where(mask > 0, jnp.exp(s_masked - safe_m), jnp.float32(0.0))
    denom = jnp.sum(e, axis=1, keepdims=True)        # (G, 1, 1)
    att = e / jnp.where(denom > 0, denom, jnp.float32(1.0))  # (G, T, 1)

    # Weighted sum over tokens: VPU multiply + sublane reduce (no M=1 matmul).
    out = jnp.sum(att * x, axis=1)                   # (G, D)
    out_ref[...] = out.astype(out_ref.dtype)


def _choose_group(N, T_pad, D, P, vmem_budget_bytes=12 * 1024 * 1024):
    """Pick how many sentences (G) to process per grid step.

    Rough per-sentence f32 VMEM footprint: x block (double-buffered), the
    lane-padded mask block (double-buffered), proj/score/att intermediates and
    the output block.  Conservative so it also fits v5e's smaller scoped VMEM
    and v7x's 64 MiB physical VMEM.
    """
    lane = 128
    per_sentence = 4 * T_pad * (
        2 * D            # x block, double-buffered
        + 2 * lane       # mask block (lane-padded to 128), double-buffered
        + max(P, lane)   # proj intermediate
        + 2 * lane       # scores / att intermediates
        + D              # att * x temporary
    )
    per_sentence += 4 * 2 * max(D, lane)   # output block, double-buffered
    g = max(8, vmem_budget_bytes // max(per_sentence, 1))
    g = min(g, 512)                         # keep grid length >= 2 for big N (v7x megacore)
    g = min(g, ((N + 7) // 8) * 8)          # never larger than (8-rounded) N
    return max(8, (g // 8) * 8)


def word_attention(x, token_mask, w1, b1, w2, b2, *, group=None):
    """x: (B, S, T, D) float32, token_mask: (B, S, T) {0,1}.
    Returns (out: (B, S, D), mask: (B, S))."""
    B, S, T, D = x.shape
    P = w1.shape[1]
    N = B * S

    T_pad = ((T + 7) // 8) * 8
    G = group if group is not None else _choose_group(N, T_pad, D, P)
    N_pad = pl.cdiv(N, G) * G

    xf = x.reshape(N, T, D)
    mf = token_mask.reshape(N, T).astype(x.dtype)

    if T_pad != T:
        xf = jnp.pad(xf, ((0, 0), (0, T_pad - T), (0, 0)))
        mf = jnp.pad(mf, ((0, 0), (0, T_pad - T)))
    if N_pad != N:
        xf = jnp.pad(xf, ((0, N_pad - N), (0, 0), (0, 0)))
        mf = jnp.pad(mf, ((0, N_pad - N), (0, 0)))

    mf = mf.reshape(N_pad, T_pad, 1)   # sublane-major mask, matches score layout
    b1r = b1.reshape(1, P)
    w2t = w2.reshape(1, P)             # (P, 1) -> (1, P) row vector
    del b2                             # constant pre-softmax shift: no effect on output

    out = pl.pallas_call(
        word_attention_kernel,
        out_shape=jax.ShapeDtypeStruct((N_pad, D), x.dtype),
        grid_spec=pltpu.PrefetchScalarGridSpec(
            num_scalar_prefetch=0,
            grid=(N_pad // G,),
            in_specs=[
                pl.BlockSpec((G, T_pad, D), lambda i: (i, 0, 0)),   # x
                pl.BlockSpec((G, T_pad, 1), lambda i: (i, 0, 0)),   # token_mask
                pl.BlockSpec((D, P), lambda i: (0, 0)),             # W1 (resident)
                pl.BlockSpec((1, P), lambda i: (0, 0)),             # b1 (resident)
                pl.BlockSpec((1, P), lambda i: (0, 0)),             # W2^T (resident)
            ],
            out_specs=pl.BlockSpec((G, D), lambda i: (i, 0)),
        ),
        compiler_params=pltpu.CompilerParams(
            dimension_semantics=("parallel",),
        ),
    )(xf, mf, w1, b1r, w2t)

    out = out[:N].reshape(B, S, D)
    mask = token_mask[:, :, 0]
    return out, mask


def _reference(x, token_mask, w1, b1, w2, b2):
    B, S, T, D = x.shape
    xf = x.reshape(-1, T, D)
    proj = jnp.tanh(xf @ w1 + b1)                       # (N, T, P)
    scores = (proj @ w2).squeeze(-1) + b2[0]            # (N, T)
    mf = token_mask.reshape(-1, T).astype(jnp.float32)
    s_masked = jnp.where(mf > 0, scores, -jnp.inf)
    m = jnp.max(s_masked, axis=-1, keepdims=True)
    safe_m = jnp.where(jnp.isfinite(m), m, 0.0)
    e = jnp.where(mf > 0, jnp.exp(s_masked - safe_m), 0.0)
    denom = jnp.sum(e, axis=-1, keepdims=True)
    att = jnp.where(denom > 0, e / denom, 0.0)          # (N, T)
    out = jnp.einsum("nt,ntd->nd", att, xf).reshape(B, S, D)
    return out, token_mask[:, :, 0]


if __name__ == "__main__":
    # Small shapes consistent with WordAttention's forward:
    # x: (BATCH, N_sentence, N_token, INPUT_SIZE), token_mask: (BATCH, N_sentence, N_token)
    B, S, T, D, P = 2, 3, 8, 32, 16

    key = jax.random.PRNGKey(0)
    kx, km, k1, kb1, k2, kb2 = jax.random.split(key, 6)

    x = jax.random.normal(kx, (B, S, T, D), dtype=jnp.float32)
    token_mask = (jax.random.uniform(km, (B, S, T)) > 0.3).astype(jnp.int32)
    # Exercise the fully-masked (NaN -> 0) path on one sentence.
    token_mask = token_mask.at[1, 2, :].set(0)

    # Deterministic parameter init (Linear(D, P) and Linear(P, 1), with bias).
    w1 = jax.random.normal(k1, (D, P), dtype=jnp.float32) * 0.1
    b1 = jax.random.normal(kb1, (P,), dtype=jnp.float32) * 0.1
    w2 = jax.random.normal(k2, (P, 1), dtype=jnp.float32) * 0.1
    b2 = jax.random.normal(kb2, (1,), dtype=jnp.float32) * 0.1

    out, mask = word_attention(x, token_mask, w1, b1, w2, b2)
    out = jax.block_until_ready(out)
    mask = jax.block_until_ready(mask)

    ref_out, ref_mask = _reference(x, token_mask, w1, b1, w2, b2)
    assert out.shape == (B, S, D) and mask.shape == (B, S)
    assert jnp.allclose(out, ref_out, atol=1e-5, rtol=1e-5)
    assert jnp.array_equal(mask, ref_mask)

    print("KERNEL_OK")
</pallas_src>

<mosaic_0001>
module attributes {stable_mosaic.version = 11 : i64} {
  func.func @word_attention_kernel(%arg0: i32, %arg1: memref<8x8x32xf32, #tpu.memory_space<vmem>>, %arg2: memref<8x8x1xf32, #tpu.memory_space<vmem>>, %arg3: memref<32x16xf32, #tpu.memory_space<vmem>>, %arg4: memref<1x16xf32, #tpu.memory_space<vmem>>, %arg5: memref<1x16xf32, #tpu.memory_space<vmem>>, %arg6: memref<8x32xf32, #tpu.memory_space<vmem>>) attributes {dimension_semantics = [#tpu.dimension_semantics<parallel>], iteration_bounds = array<i64: 1>, scalar_prefetch = 0 : i64, scratch_operands = 0 : i64, tpu.core_type = #tpu.core_type<tc>, window_params = [{transform_indices = @transform_0, window_bounds = array<i64: 8, 8, 32>}, {transform_indices = @transform_1, window_bounds = array<i64: 8, 8, 1>}, {pipeline_mode = #tpu.pipeline_mode<synchronous>, transform_indices = @transform_2, window_bounds = array<i64: 32, 16>}, {pipeline_mode = #tpu.pipeline_mode<synchronous>, transform_indices = @transform_3, window_bounds = array<i64: 1, 16>}, {pipeline_mode = #tpu.pipeline_mode<synchronous>, transform_indices = @transform_4, window_bounds = array<i64: 1, 16>}, {transform_indices = @transform_5, window_bounds = array<i64: 8, 32>}]} {
    %c0 = arith.constant 0 : index
    %c0_0 = arith.constant 0 : index
    %c0_1 = arith.constant 0 : index
    %0 = vector.load %arg1[%c0, %c0_0, %c0_1] : memref<8x8x32xf32, #tpu.memory_space<vmem>>, vector<8x8x32xf32>
    %1 = vector.shape_cast %0 : vector<8x8x32xf32> to vector<64x32xf32>
    %c0_2 = arith.constant 0 : index
    %c0_3 = arith.constant 0 : index
    %2 = vector.load %arg3[%c0_2, %c0_3] : memref<32x16xf32, #tpu.memory_space<vmem>>, vector<32x16xf32>
    %cst = arith.constant dense<0.000000e+00> : vector<64x16xf32>
    %3 = tpu.matmul %1, %2, %cst {dimension_numbers = #tpu.dot_dimension_numbers<[1], [0], [0], [1], [0, 0, 1, 1], [], []>} : vector<64x32xf32>, vector<32x16xf32>, vector<64x16xf32> -> vector<64x16xf32>
    %c0_4 = arith.constant 0 : index
    %c0_5 = arith.constant 0 : index
    %4 = vector.load %arg4[%c0_4, %c0_5] : memref<1x16xf32, #tpu.memory_space<vmem>>, vector<1x16xf32>
    %5 = vector.broadcast %4 : vector<1x16xf32> to vector<64x16xf32>
    %6 = arith.addf %3, %5 : vector<64x16xf32>
    %7 = math.tanh %6 : vector<64x16xf32>
    %c0_6 = arith.constant 0 : index
    %c0_7 = arith.constant 0 : index
    %8 = vector.load %arg5[%c0_6, %c0_7] : memref<1x16xf32, #tpu.memory_space<vmem>>, vector<1x16xf32>
    %9 = vector.broadcast %8 : vector<1x16xf32> to vector<64x16xf32>
    %10 = arith.mulf %7, %9 : vector<64x16xf32>
    %cst_8 = arith.constant dense<0.000000e+00> : vector<64xf32>
    %11 = vector.multi_reduction <add>, %10, %cst_8 [1] : vector<64x16xf32> to vector<64xf32>
    %12 = vector.shape_cast %11 : vector<64xf32> to vector<64x1xf32>
    %13 = vector.shape_cast %12 : vector<64x1xf32> to vector<8x8x1xf32>
    %c0_9 = arith.constant 0 : index
    %c0_10 = arith.constant 0 : index
    %c0_11 = arith.constant 0 : index
    %14 = vector.load %arg2[%c0_9, %c0_10, %c0_11] : memref<8x8x1xf32, #tpu.memory_space<vmem>>, vector<8x8x1xf32>
    %cst_12 = arith.constant 0.000000e+00 : f32
    %15 = vector.broadcast %cst_12 : f32 to vector<8x8x1xf32>
    %16 = arith.cmpf ogt, %14, %15 : vector<8x8x1xf32>
    %cst_13 = arith.constant 0xFF800000 : f32
    %17 = vector.broadcast %cst_13 : f32 to vector<8x8x1xf32>
    %18 = arith.select %16, %13, %17 : vector<8x8x1xi1>, vector<8x8x1xf32>
    %cst_14 = arith.constant dense<0xFF800000> : vector<8x1xf32>
    %19 = vector.multi_reduction <maximumf>, %18, %cst_14 [1] : vector<8x8x1xf32> to vector<8x1xf32>
    %20 = vector.shape_cast %19 : vector<8x1xf32> to vector<8x1x1xf32>
    %21 = tpu.weird %20 : vector<8x1x1xf32> -> vector<8x1x1xi1>
    %cst_15 = arith.constant dense<true> : vector<8x1x1xi1>
    %22 = arith.xori %21, %cst_15 : vector<8x1x1xi1>
    %cst_16 = arith.constant 0.000000e+00 : f32
    %23 = vector.broadcast %cst_16 : f32 to vector<8x1x1xf32>
    %24 = arith.select %22, %20, %23 : vector<8x1x1xi1>, vector<8x1x1xf32>
    %cst_17 = arith.constant 0.000000e+00 : f32
    %25 = vector.broadcast %cst_17 : f32 to vector<8x8x1xf32>
    %26 = arith.cmpf ogt, %14, %25 : vector<8x8x1xf32>
    %27 = vector.broadcast %24 : vector<8x1x1xf32> to vector<8x8x1xf32>
    %28 = arith.subf %18, %27 : vector<8x8x1xf32>
    %29 = math.exp %28 : vector<8x8x1xf32>
    %cst_18 = arith.constant 0.000000e+00 : f32
    %30 = vector.broadcast %cst_18 : f32 to vector<8x8x1xf32>
    %31 = arith.select %26, %29, %30 : vector<8x8x1xi1>, vector<8x8x1xf32>
    %cst_19 = arith.constant dense<0.000000e+00> : vector<8x1xf32>
    %32 = vector.multi_reduction <add>, %31, %cst_19 [1] : vector<8x8x1xf32> to vector<8x1xf32>
    %33 = vector.shape_cast %32 : vector<8x1xf32> to vector<8x1x1xf32>
    %cst_20 = arith.constant 0.000000e+00 : f32
    %34 = vector.broadcast %cst_20 : f32 to vector<8x1x1xf32>
    %35 = arith.cmpf ogt, %33, %34 : vector<8x1x1xf32>
    %cst_21 = arith.constant 1.000000e+00 : f32
    %36 = vector.broadcast %cst_21 : f32 to vector<8x1x1xf32>
    %37 = arith.select %35, %33, %36 : vector<8x1x1xi1>, vector<8x1x1xf32>
    %38 = vector.broadcast %37 : vector<8x1x1xf32> to vector<8x8x1xf32>
    %39 = arith.divf %31, %38 : vector<8x8x1xf32>
    %40 = vector.broadcast %39 : vector<8x8x1xf32> to vector<8x8x32xf32>
    %41 = arith.mulf %40, %0 : vector<8x8x32xf32>
    %cst_22 = arith.constant dense<0.000000e+00> : vector<8x32xf32>
    %42 = vector.multi_reduction <add>, %41, %cst_22 [1] : vector<8x8x32xf32> to vector<8x32xf32>
    %c0_23 = arith.constant 0 : index
    %c0_24 = arith.constant 0 : index
    %43 = vector.load %arg6[%c0_23, %c0_24] : memref<8x32xf32, #tpu.memory_space<vmem>>, vector<8x32xf32>
    tpu.vector_store %arg6[%c0_23, %c0_24], %42 {strides = array<i32>} : memref<8x32xf32, #tpu.memory_space<vmem>>, vector<8x32xf32>,
    return
  }
  func.func @transform_0(%arg0: i32) -> (i32, i32, i32) {
    %c0_i32 = arith.constant 0 : i32
    %c0_i32_0 = arith.constant 0 : i32
    %c0_i32_1 = arith.constant 0 : i32
    return %arg0, %c0_i32, %c0_i32_0 : i32, i32, i32
  }
  func.func @transform_1(%arg0: i32) -> (i32, i32, i32) {
    %c0_i32 = arith.constant 0 : i32
    %c0_i32_0 = arith.constant 0 : i32
    %c0_i32_1 = arith.constant 0 : i32
    return %arg0, %c0_i32, %c0_i32_0 : i32, i32, i32
  }
  func.func @transform_2(%arg0: i32) -> (i32, i32) {
    %c0_i32 = arith.constant 0 : i32
    %c0_i32_0 = arith.constant 0 : i32
    %c0_i32_1 = arith.constant 0 : i32
    return %c0_i32, %c0_i32_0 : i32, i32
  }
  func.func @transform_3(%arg0: i32) -> (i32, i32) {
    %c0_i32 = arith.constant 0 : i32
    %c0_i32_0 = arith.constant 0 : i32
    %c0_i32_1 = arith.constant 0 : i32
    return %c0_i32, %c0_i32_0 : i32, i32
  }
  func.func @transform_4(%arg0: i32) -> (i32, i32) {
    %c0_i32 = arith.constant 0 : i32
    %c0_i32_0 = arith.constant 0 : i32
    %c0_i32_1 = arith.constant 0 : i32
    return %c0_i32, %c0_i32_0 : i32, i32
  }
  func.func @transform_5(%arg0: i32) -> (i32, i32) {
    %c0_i32 = arith.constant 0 : i32
    %c0_i32_0 = arith.constant 0 : i32
    return %arg0, %c0_i32 : i32, i32
  }
}

</mosaic_0001>

<llo_original>
// kernel: tpu_custom_call.1
$region0: #{tpu_custom_call.1}
  #allocation0 [shape = 'u32[]', space=smem, size = 0x4, offset = 0x4, fixed_abs, tag = 'smem constant byte address 0x4 - core index']
  #allocation1 [shape = 'u32[144,128]{1,0:T(1,128)}', space=vmem, size = 0x12000, scoped, tag = 'internal scratch']
  %s0 = inlined_call_operand.vmem [shape: f32[8,8,32], index: 0, kind: input, shape index: {}]
  %s1 = inlined_call_operand.vmem [shape: f32[8,8,1], index: 1, kind: input, shape index: {}]
  %s2 = inlined_call_operand.vmem [shape: f32[32,16], index: 2, kind: input, shape index: {}]
  %s3 = inlined_call_operand.vmem [shape: f32[1,16], index: 3, kind: input, shape index: {}]
  %s4 = inlined_call_operand.vmem [shape: f32[1,16], index: 4, kind: input, shape index: {}]
  %s5 = inlined_call_operand.hbm [shape: f32[8,32], index: 5, kind: output, shape index: {}]
  %s6 = sld [smem:[#allocation0]]
  $region30: #{tpu_custom_call.1} parent=0
    _
  %s8 = ssub.s32 1, %s6
  %s9 = scalar_select 0, %s8, %s6
  $region1: #{tpu_custom_call.1} parent=0
    #allocation2 [shape = 'u8[4096]{0}', space=vmem, size = 0x1000, scoped, tag = 'output window, operand 0, single buffered']
    #allocation3 [shape = 's32[1]{0}', space=sflag, size = 0x4, scoped, tag = 'scoped memory for tpu_custom_call.1']
    %10 = vsyncpa [#allocation3], 0
    // Predicated region
    $region2: #{tpu_custom_call.1} parent=1 // pred_check
      _
    $region3: #{tpu_custom_call.1} parent=1 // pred_check_branch
      %12 = sbr.rel (0) target = $region5
    $region4: #{tpu_custom_call.1} parent=1 // pred_region
      _
    $region5: #{tpu_custom_call.1} parent=1 // pred_fallthru
      _
    // Predicated region
    $region6: #{tpu_custom_call.1} parent=1 // pred_check
      _
    $region7: #{tpu_custom_call.1} parent=1 // pred_check_branch
      %14 = sbr.rel (0) target = $region9
    $region8: #{tpu_custom_call.1} parent=1 // pred_region
      _
    $region9: #{tpu_custom_call.1} parent=1 // pred_fallthru
      _
    // Predicated region
    $region10: #{tpu_custom_call.1} parent=1 // pred_check
      _
    $region11: #{tpu_custom_call.1} parent=1 // pred_check_branch
      %16 = sbr.rel (0) target = $region13
    $region12: #{tpu_custom_call.1} parent=1 // pred_region
      _
    $region13: #{tpu_custom_call.1} parent=1 // pred_fallthru
      _
    // Predicated region
    $region14: #{tpu_custom_call.1} parent=1 // pred_check
      _
    $region15: #{tpu_custom_call.1} parent=1 // pred_check_branch
      %18 = sbr.rel (0) target = $region17
    $region16: #{tpu_custom_call.1} parent=1 // pred_region
      _
    $region17: #{tpu_custom_call.1} parent=1 // pred_fallthru
      _
    // Predicated region
    $region18: #{tpu_custom_call.1} parent=1 // pred_check
      _
    $region19: #{tpu_custom_call.1} parent=1 // pred_check_branch
      %20 = sbr.rel (0) target = $region21
    $region20: #{tpu_custom_call.1} parent=1 // pred_region
      _
    $region21: #{tpu_custom_call.1} parent=1 // pred_fallthru
      _
    %v21 = vld [vmem:[%s0] sm:$0xff]
    %v22 = vld [vmem:[%s0 + $0x8] sm:$0xff]
    %v23 = vld [vmem:[%s0 + $0x10] sm:$0xff]
    %v24 = vld [vmem:[%s0 + $0x18] sm:$0xff]
    %v25 = vld [vmem:[%s0 + $0x20] sm:$0xff]
    %v26 = vld [vmem:[%s0 + $0x28] sm:$0xff]
    %v27 = vld [vmem:[%s0 + $0x30] sm:$0xff]
    %v28 = vld [vmem:[%s0 + $0x38] sm:$0xff]
    %v29 = vld [vmem:[%s2] sm:$0xff]
    %v30 = vld [vmem:[%s2 + $0x8] sm:$0xff]
    %v31 = vld [vmem:[%s2 + $0x10] sm:$0xff]
    %v32 = vld [vmem:[%s2 + $0x18] sm:$0xff]
    %v33 = vld [vmem:[%s3] sm:$0x1]
    %v35 = vlaneseq
    %v36 = vshrl.u32 %v35, 7
    %v37 = vsub.s32 0, %v36
    %v38 = vrot.slane %v33, %v37
    %vm40 = vcmask 261120
    %v42 = vsel %vm40, %v21, 0
    %v45 = vsel %vm40, %v22, 0
    %v48 = vsel %vm40, %v23, 0
    %v51 = vsel %vm40, %v24, 0
    %v54 = vsel %vm40, %v25, 0
    %v57 = vsel %vm40, %v26, 0
    %v60 = vsel %vm40, %v27, 0
    %v63 = vsel %vm40, %v28, 0
    %65 = vmatprep.subr.mxu0 0.0
    %66 = vmatpush1.msra.mxu0 0.0
    %67 = vmatprep.subr.mxu0 0.0
    %68 = vmatpush1.msra.mxu0 0.0
    %69 = vmatprep.subr.mxu0 0.0
    %70 = vmatpush1.msra.mxu0 0.0
    %71 = vmatprep.subr.mxu0 0.0
    %72 = vmatpush1.msra.mxu0 0.0
    %73 = vmatprep.subr.mxu0 0.0
    %74 = vmatpush1.msra.mxu0 0.0
    %75 = vmatprep.subr.mxu0 0.0
    %76 = vmatpush1.msra.mxu0 0.0
    %77 = vmatprep.subr.mxu0 0.0
    %78 = vmatpush1.msra.mxu0 0.0
    %79 = vmatprep.subr.mxu0 0.0
    %80 = vmatpush1.msra.mxu0 0.0
    %81 = vmatprep.subr.mxu0 0.0
    %82 = vmatpush1.msra.mxu0 0.0
    %83 = vmatprep.subr.mxu0 0.0
    %84 = vmatpush1.msra.mxu0 0.0
    %85 = vmatprep.subr.mxu0 0.0
    %86 = vmatpush1.msra.mxu0 0.0
    %87 = vmatprep.subr.mxu0 0.0
    %88 = vmatpush1.msra.mxu0 0.0
    %89 = vmatprep.subr.mxu0 0.0
    %90 = vmatpush1.msra.mxu0 %v32
    %91 = vmatprep.subr.mxu0 0.0
    %92 = vmatpush1.msra.mxu0 %v31
    %93 = vmatprep.subr.mxu0 0.0
    %94 = vmatpush1.msra.mxu0 %v30
    %95 = vmatprep.subr.mxu0 0.0
    %96 = vmatpush1.msra.mxu0 %v29
    %97 = vmatprep.subr.mxu0 0.0
    %98 = vmatpush2.msra.mxu0 0.0
    %99 = vmatprep.subr.mxu0 0.0
    %100 = vmatpush2.msra.mxu0 0.0
    %101 = vmatprep.subr.mxu0 0.0
    %102 = vmatpush2.msra.mxu0 0.0
    %103 = vmatprep.subr.mxu0 0.0
    %104 = vmatpush2.msra.mxu0 0.0
    %105 = vmatprep.subr.mxu0 0.0
    %106 = vmatpush2.msra.mxu0 0.0
    %107 = vmatprep.subr.mxu0 0.0
    %108 = vmatpush2.msra.mxu0 0.0
    %109 = vmatprep.subr.mxu0 0.0
    %110 = vmatpush2.msra.mxu0 0.0
    %111 = vmatprep.subr.mxu0 0.0
    %112 = vmatpush2.msra.mxu0 0.0
    %113 = vmatprep.subr.mxu0 0.0
    %114 = vmatpush2.msra.mxu0 0.0
    %115 = vmatprep.subr.mxu0 0.0
    %116 = vmatpush2.msra.mxu0 0.0
    %117 = vmatprep.subr.mxu0 0.0
    %118 = vmatpush2.msra.mxu0 0.0
    %119 = vmatprep.subr.mxu0 0.0
    %120 = vmatpush2.msra.mxu0 0.0
    %121 = vmatprep.subr.mxu0 0.0
    %122 = vmatpush2.msra.mxu0 0.0
    %123 = vmatprep.subr.mxu0 0.0
    %124 = vmatpush2.msra.mxu0 0.0
    %125 = vmatprep.subr.mxu0 0.0
    %126 = vmatpush2.msra.mxu0 0.0
    %127 = vmatprep.subr.mxu0 0.0
    %128 = vmatpush2.msra.mxu0 0.0
    %129 = vmatprep.mubr.f32.mxu0 0.0
    %130 = vmatmul.mubr.f32.gmra.mxu0 %v42
    %v131 = vpop.f32.mrf.mxu0
    %v132 = vadd.f32 %v38, %v131
    %v133 = vpop.f32.mrf.mxu0
    %134 = vmatprep.mubr.f32.mxu0 0.0
    %135 = vmatmul.mubr.f32.gmra.mxu0 %v45
    %v136 = vpop.f32.mrf.mxu0
    %v137 = vadd.f32 %v38, %v136
    %v138 = vpop.f32.mrf.mxu0
    %139 = vmatprep.mubr.f32.mxu0 0.0
    %140 = vmatmul.mubr.f32.gmra.mxu0 %v48
    %v141 = vpop.f32.mrf.mxu0
    %v142 = vadd.f32 %v38, %v141
    %v143 = vpop.f32.mrf.mxu0
    %144 = vmatprep.mubr.f32.mxu0 0.0
    %145 = vmatmul.mubr.f32.gmra.mxu0 %v51
    %v146 = vpop.f32.mrf.mxu0
    %v147 = vadd.f32 %v38, %v146
    %v148 = vpop.f32.mrf.mxu0
    %149 = vmatprep.mubr.f32.mxu0 0.0
    %150 = vmatmul.mubr.f32.gmra.mxu0 %v54
    %v151 = vpop.f32.mrf.mxu0
    %v152 = vadd.f32 %v38, %v151
    %v153 = vpop.f32.mrf.mxu0
    %154 = vmatprep.mubr.f32.mxu0 0.0
    %155 = vmatmul.mubr.f32.gmra.mxu0 %v57
    %v156 = vpop.f32.mrf.mxu0
    %v157 = vadd.f32 %v38, %v156
    %v158 = vpop.f32.mrf.mxu0
    %159 = vmatprep.mubr.f32.mxu0 0.0
    %160 = vmatmul.mubr.f32.gmra.mxu0 %v60
    %v161 = vpop.f32.mrf.mxu0
    %v162 = vadd.f32 %v38, %v161
    %v163 = vpop.f32.mrf.mxu0
    %164 = vmatprep.mubr.f32.mxu0 0.0
    %165 = vmatmul.mubr.f32.gmra.mxu0 %v63
    %v166 = vpop.f32.mrf.mxu0
    %v167 = vadd.f32 %v38, %v166
    %v168 = vpop.f32.mrf.mxu0
    %169 = vdwg.mxu0
    %v170 = vtanh.pop %v132
    %v171 = vtanh.pop %v137
    %v172 = vtanh.pop %v142
    %v173 = vtanh.pop %v147
    %v174 = vtanh.pop %v152
    %v175 = vtanh.pop %v157
    %v176 = vtanh.pop %v162
    %v177 = vtanh.pop %v167
    %v178 = vld [vmem:[%s4] sm:$0x1]
    %v180 = vlaneseq
    %v181 = vshrl.u32 %v180, 7
    %v182 = vsub.s32 0, %v181
    %v183 = vrot.slane %v178, %v182
    %v185 = vmul.f32 %v170, %v183
    %v186 = vmul.f32 %v171, %v183
    %v187 = vmul.f32 %v172, %v183
    %v188 = vmul.f32 %v173, %v183
    %v189 = vmul.f32 %v174, %v183
    %v190 = vmul.f32 %v175, %v183
    %v191 = vmul.f32 %v176, %v183
    %v192 = vmul.f32 %v177, %v183
    %vm193 = vcmask 130048
    %v194 = vsel %vm193, %v185, 0.0
    %195 = vadd.xlane.f32.xlu0 %v194
    %v196 = vpop.xlane.xlu0 %195
    %v197 = vsel %vm193, %v186, 0.0
    %198 = vadd.xlane.f32.xlu0 %v197
    %v199 = vpop.xlane.xlu0 %198
    %v200 = vsel %vm193, %v187, 0.0
    %201 = vadd.xlane.f32.xlu0 %v200
    %v202 = vpop.xlane.xlu0 %201
    %v203 = vsel %vm193, %v188, 0.0
    %204 = vadd.xlane.f32.xlu0 %v203
    %v205 = vpop.xlane.xlu0 %204
    %v206 = vsel %vm193, %v189, 0.0
    %207 = vadd.xlane.f32.xlu0 %v206
    %v208 = vpop.xlane.xlu0 %207
    %v209 = vsel %vm193, %v190, 0.0
    %210 = vadd.xlane.f32.xlu0 %v209
    %v211 = vpop.xlane.xlu0 %210
    %v212 = vsel %vm193, %v191, 0.0
    %213 = vadd.xlane.f32.xlu0 %v212
    %v214 = vpop.xlane.xlu0 %213
    %v215 = vsel %vm193, %v192, 0.0
    %216 = vadd.xlane.f32.xlu0 %v215
    %v217 = vpop.xlane.xlu0 %216
    %v218 = vld [vmem:[%s1] sm:$0xff]
    %v219 = vld [vmem:[%s1 + $0x8] sm:$0xff]
    %v220 = vld [vmem:[%s1 + $0x10] sm:$0xff]
    %v221 = vld [vmem:[%s1 + $0x18] sm:$0xff]
    %v222 = vld [vmem:[%s1 + $0x20] sm:$0xff]
    %v223 = vld [vmem:[%s1 + $0x28] sm:$0xff]
    %v224 = vld [vmem:[%s1 + $0x30] sm:$0xff]
    %v225 = vld [vmem:[%s1 + $0x38] sm:$0xff]
    %vm226 = vcmp.gt.f32.partialorder %v218, 0.0
    %vm227 = vcmp.gt.f32.partialorder %v219, 0.0
    %vm228 = vcmp.gt.f32.partialorder %v220, 0.0
    %vm229 = vcmp.gt.f32.partialorder %v221, 0.0
    %vm230 = vcmp.gt.f32.partialorder %v222, 0.0
    %vm231 = vcmp.gt.f32.partialorder %v223, 0.0
    %vm232 = vcmp.gt.f32.partialorder %v224, 0.0
    %vm233 = vcmp.gt.f32.partialorder %v225, 0.0
    %v234 = vsel %vm226, %v196, -inf
    %v235 = vsel %vm227, %v199, -inf
    %v236 = vsel %vm228, %v202, -inf
    %v237 = vsel %vm229, %v205, -inf
    %v238 = vsel %vm230, %v208, -inf
    %v239 = vsel %vm231, %v211, -inf
    %v240 = vsel %vm232, %v214, -inf
    %v241 = vsel %vm233, %v217, -inf
    %vm242 = vcmask 7168
    %v243 = vsel %vm242, %v234, -inf
    %v244 = vrot.slane %v243, 4
    %v245 = vmax.f32 %v243, %v244
    %v246 = vrot.slane %v245, 2
    %v247 = vmax.f32 %v245, %v246
    %v248 = vrot.slane %v247, 1
    %v249 = vmax.f32 %v247, %v248
    %v250 = vsel %vm242, %v235, -inf
    %v251 = vrot.slane %v250, 4
    %v252 = vmax.f32 %v250, %v251
    %v253 = vrot.slane %v252, 2
    %v254 = vmax.f32 %v252, %v253
    %v255 = vrot.slane %v254, 1
    %v256 = vmax.f32 %v254, %v255
    %v257 = vsel %vm242, %v236, -inf
    %v258 = vrot.slane %v257, 4
    %v259 = vmax.f32 %v257, %v258
    %v260 = vrot.slane %v259, 2
    %v261 = vmax.f32 %v259, %v260
    %v262 = vrot.slane %v261, 1
    %v263 = vmax.f32 %v261, %v262
    %v264 = vsel %vm242, %v237, -inf
    %v265 = vrot.slane %v264, 4
    %v266 = vmax.f32 %v264, %v265
    %v267 = vrot.slane %v266, 2
    %v268 = vmax.f32 %v266, %v267
    %v269 = vrot.slane %v268, 1
    %v270 = vmax.f32 %v268, %v269
    %v271 = vsel %vm242, %v238, -inf
    %v272 = vrot.slane %v271, 4
    %v273 = vmax.f32 %v271, %v272
    %v274 = vrot.slane %v273, 2
    %v275 = vmax.f32 %v273, %v274
    %v276 = vrot.slane %v275, 1
    %v277 = vmax.f32 %v275, %v276
    %v278 = vsel %vm242, %v239, -inf
    %v279 = vrot.slane %v278, 4
    %v280 = vmax.f32 %v278, %v279
    %v281 = vrot.slane %v280, 2
    %v282 = vmax.f32 %v280, %v281
    %v283 = vrot.slane %v282, 1
    %v284 = vmax.f32 %v282, %v283
    %v285 = vsel %vm242, %v240, -inf
    %v286 = vrot.slane %v285, 4
    %v287 = vmax.f32 %v285, %v286
    %v288 = vrot.slane %v287, 2
    %v289 = vmax.f32 %v287, %v288
    %v290 = vrot.slane %v289, 1
    %v291 = vmax.f32 %v289, %v290
    %v292 = vsel %vm242, %v241, -inf
    %v293 = vrot.slane %v292, 4
    %v294 = vmax.f32 %v292, %v293
    %v295 = vrot.slane %v294, 2
    %v296 = vmax.f32 %v294, %v295
    %v297 = vrot.slane %v296, 1
    %v298 = vmax.f32 %v296, %v297
    %vm299 = vweird.f32 %v249
    %vm300 = vweird.f32 %v256
    %vm301 = vweird.f32 %v263
    %vm302 = vweird.f32 %v270
    %vm303 = vweird.f32 %v277
    %vm304 = vweird.f32 %v284
    %vm305 = vweird.f32 %v291
    %vm306 = vweird.f32 %v298
    %vm307 = vmxor %vm299, 1
    %vm308 = vmxor %vm300, 1
    %vm309 = vmxor %vm301, 1
    %vm310 = vmxor %vm302, 1
    %vm311 = vmxor %vm303, 1
    %vm312 = vmxor %vm304, 1
    %vm313 = vmxor %vm305, 1
    %vm314 = vmxor %vm306, 1
    %v315 = vsel %vm307, %v249, 0.0
    %v316 = vsel %vm308, %v256, 0.0
    %v317 = vsel %vm309, %v263, 0.0
    %v318 = vsel %vm310, %v270, 0.0
    %v319 = vsel %vm311, %v277, 0.0
    %v320 = vsel %vm312, %v284, 0.0
    %v321 = vsel %vm313, %v291, 0.0
    %v322 = vsel %vm314, %v298, 0.0
    %v323 = vsub.f32 %v234, %v315
    %v324 = vsub.f32 %v235, %v316
    %v325 = vsub.f32 %v236, %v317
    %v326 = vsub.f32 %v237, %v318
    %v327 = vsub.f32 %v238, %v319
    %v328 = vsub.f32 %v239, %v320
    %v329 = vsub.f32 %v240, %v321
    %v330 = vsub.f32 %v241, %v322
    %v331 = vmul.f32 %v323, 1.442695
    %v332 = vpow.pop %v331
    %v333 = vmul.f32 %v324, 1.442695
    %v334 = vpow.pop %v333
    %v335 = vmul.f32 %v325, 1.442695
    %v336 = vpow.pop %v335
    %v337 = vmul.f32 %v326, 1.442695
    %v338 = vpow.pop %v337
    %v339 = vmul.f32 %v327, 1.442695
    %v340 = vpow.pop %v339
    %v341 = vmul.f32 %v328, 1.442695
    %v342 = vpow.pop %v341
    %v343 = vmul.f32 %v329, 1.442695
    %v344 = vpow.pop %v343
    %v345 = vmul.f32 %v330, 1.442695
    %v346 = vpow.pop %v345
    %v347 = vsel %vm226, %v332, 0.0
    %v348 = vsel %vm227, %v334, 0.0
    %v349 = vsel %vm228, %v336, 0.0
    %v350 = vsel %vm229, %v338, 0.0
    %v351 = vsel %vm230, %v340, 0.0
    %v352 = vsel %vm231, %v342, 0.0
    %v353 = vsel %vm232, %v344, 0.0
    %v354 = vsel %vm233, %v346, 0.0
    %v355 = vsel %vm242, %v347, 0.0
    %v356 = vrot.slane %v355, 4
    %v357 = vadd.f32 %v355, %v356
    %v358 = vrot.slane %v357, 2
    %v359 = vadd.f32 %v357, %v358
    %v360 = vrot.slane %v359, 1
    %v361 = vadd.f32 %v359, %v360
    %v362 = vsel %vm242, %v348, 0.0
    %v363 = vrot.slane %v362, 4
    %v364 = vadd.f32 %v362, %v363
    %v365 = vrot.slane %v364, 2
    %v366 = vadd.f32 %v364, %v365
    %v367 = vrot.slane %v366, 1
    %v368 = vadd.f32 %v366, %v367
    %v369 = vsel %vm242, %v349, 0.0
    %v370 = vrot.slane %v369, 4
    %v371 = vadd.f32 %v369, %v370
    %v372 = vrot.slane %v371, 2
    %v373 = vadd.f32 %v371, %v372
    %v374 = vrot.slane %v373, 1
    %v375 = vadd.f32 %v373, %v374
    %v376 = vsel %vm242, %v350, 0.0
    %v377 = vrot.slane %v376, 4
    %v378 = vadd.f32 %v376, %v377
    %v379 = vrot.slane %v378, 2
    %v380 = vadd.f32 %v378, %v379
    %v381 = vrot.slane %v380, 1
    %v382 = vadd.f32 %v380, %v381
    %v383 = vsel %vm242, %v351, 0.0
    %v384 = vrot.slane %v383, 4
    %v385 = vadd.f32 %v383, %v384
    %v386 = vrot.slane %v385, 2
    %v387 = vadd.f32 %v385, %v386
    %v388 = vrot.slane %v387, 1
    %v389 = vadd.f32 %v387, %v388
    %v390 = vsel %vm242, %v352, 0.0
    %v391 = vrot.slane %v390, 4
    %v392 = vadd.f32 %v390, %v391
    %v393 = vrot.slane %v392, 2
    %v394 = vadd.f32 %v392, %v393
    %v395 = vrot.slane %v394, 1
    %v396 = vadd.f32 %v394, %v395
    %v397 = vsel %vm242, %v353, 0.0
    %v398 = vrot.slane %v397, 4
    %v399 = vadd.f32 %v397, %v398
    %v400 = vrot.slane %v399, 2
    %v401 = vadd.f32 %v399, %v400
    %v402 = vrot.slane %v401, 1
    %v403 = vadd.f32 %v401, %v402
    %v404 = vsel %vm242, %v354, 0.0
    %v405 = vrot.slane %v404, 4
    %v406 = vadd.f32 %v404, %v405
    %v407 = vrot.slane %v406, 2
    %v408 = vadd.f32 %v406, %v407
    %v409 = vrot.slane %v408, 1
    %v410 = vadd.f32 %v408, %v409
    %vm411 = vcmp.gt.f32.partialorder %v361, 0.0
    %vm412 = vcmp.gt.f32.partialorder %v368, 0.0
    %vm413 = vcmp.gt.f32.partialorder %v375, 0.0
    %vm414 = vcmp.gt.f32.partialorder %v382, 0.0
    %vm415 = vcmp.gt.f32.partialorder %v389, 0.0
    %vm416 = vcmp.gt.f32.partialorder %v396, 0.0
    %vm417 = vcmp.gt.f32.partialorder %v403, 0.0
    %vm418 = vcmp.gt.f32.partialorder %v410, 0.0
    %v419 = vsel %vm411, %v361, 1.0
    %v420 = vsel %vm412, %v368, 1.0
    %v421 = vsel %vm413, %v375, 1.0
    %v422 = vsel %vm414, %v382, 1.0
    %v423 = vsel %vm415, %v389, 1.0
    %v424 = vsel %vm416, %v396, 1.0
    %v425 = vsel %vm417, %v403, 1.0
    %v426 = vsel %vm418, %v410, 1.0
    %v427 = vrcp.pop %v419
    %v428 = vmul.f32 %v347, %v427
    %v429 = vrcp.pop %v420
    %v430 = vmul.f32 %v348, %v429
    %v431 = vrcp.pop %v421
    %v432 = vmul.f32 %v349, %v431
    %v433 = vrcp.pop %v422
    %v434 = vmul.f32 %v350, %v433
    %v435 = vrcp.pop %v423
    %v436 = vmul.f32 %v351, %v435
    %v437 = vrcp.pop %v424
    %v438 = vmul.f32 %v352, %v437
    %v439 = vrcp.pop %v425
    %v440 = vmul.f32 %v353, %v439
    %v441 = vrcp.pop %v426
    %v442 = vmul.f32 %v354, %v441
    %444 = vset.pattern.permute.xlu0 0
    %445 = vperm.xlu0 %444, %v428
    %v446 = vpop.permute.xlu0 %445
    %449 = vset.pattern.permute.xlu0 0
    %450 = vperm.xlu0 %449, %v430
    %v451 = vpop.permute.xlu0 %450
    %454 = vset.pattern.permute.xlu0 0
    %455 = vperm.xlu0 %454, %v432
    %v456 = vpop.permute.xlu0 %455
    %459 = vset.pattern.permute.xlu0 0
    %460 = vperm.xlu0 %459, %v434
    %v461 = vpop.permute.xlu0 %460
    %464 = vset.pattern.permute.xlu0 0
    %465 = vperm.xlu0 %464, %v436
    %v466 = vpop.permute.xlu0 %465
    %469 = vset.pattern.permute.xlu0 0
    %470 = vperm.xlu0 %469, %v438
    %v471 = vpop.permute.xlu0 %470
    %474 = vset.pattern.permute.xlu0 0
    %475 = vperm.xlu0 %474, %v440
    %v476 = vpop.permute.xlu0 %475
    %479 = vset.pattern.permute.xlu0 0
    %480 = vperm.xlu0 %479, %v442
    %v481 = vpop.permute.xlu0 %480
    %v483 = vmul.f32 %v446, %v21
    %v484 = vmul.f32 %v451, %v22
    %v485 = vmul.f32 %v456, %v23
    %v486 = vmul.f32 %v461, %v24
    %v487 = vmul.f32 %v466, %v25
    %v488 = vmul.f32 %v471, %v26
    %v489 = vmul.f32 %v476, %v27
    %v490 = vmul.f32 %v481, %v28
    %v491 = vsel %vm40, %v483, 0.0
    %v492 = vrot.slane %v491, 4
    %v493 = vadd.f32 %v491, %v492
    %v494 = vrot.slane %v493, 2
    %v495 = vadd.f32 %v493, %v494
    %v496 = vrot.slane %v495, 1
    %v497 = vadd.f32 %v495, %v496
    %v498 = vsel %vm40, %v484, 0.0
    %v499 = vrot.slane %v498, 4
    %v500 = vadd.f32 %v498, %v499
    %v501 = vrot.slane %v500, 2
    %v502 = vadd.f32 %v500, %v501
    %v503 = vrot.slane %v502, 1
    %v504 = vadd.f32 %v502, %v503
    %v505 = vsel %vm40, %v485, 0.0
    %v506 = vrot.slane %v505, 4
    %v507 = vadd.f32 %v505, %v506
    %v508 = vrot.slane %v507, 2
    %v509 = vadd.f32 %v507, %v508
    %v510 = vrot.slane %v509, 1
    %v511 = vadd.f32 %v509, %v510
    %v512 = vsel %vm40, %v486, 0.0
    %v513 = vrot.slane %v512, 4
    %v514 = vadd.f32 %v512, %v513
    %v515 = vrot.slane %v514, 2
    %v516 = vadd.f32 %v514, %v515
    %v517 = vrot.slane %v516, 1
    %v518 = vadd.f32 %v516, %v517
    %v519 = vsel %vm40, %v487, 0.0
    %v520 = vrot.slane %v519, 4
    %v521 = vadd.f32 %v519, %v520
    %v522 = vrot.slane %v521, 2
    %v523 = vadd.f32 %v521, %v522
    %v524 = vrot.slane %v523, 1
    %v525 = vadd.f32 %v523, %v524
    %v526 = vsel %vm40, %v488, 0.0
    %v527 = vrot.slane %v526, 4
    %v528 = vadd.f32 %v526, %v527
    %v529 = vrot.slane %v528, 2
    %v530 = vadd.f32 %v528, %v529
    %v531 = vrot.slane %v530, 1
    %v532 = vadd.f32 %v530, %v531
    %v533 = vsel %vm40, %v489, 0.0
    %v534 = vrot.slane %v533, 4
    %v535 = vadd.f32 %v533, %v534
    %v536 = vrot.slane %v535, 2
    %v537 = vadd.f32 %v535, %v536
    %v538 = vrot.slane %v537, 1
    %v539 = vadd.f32 %v537, %v538
    %v540 = vsel %vm40, %v490, 0.0
    %v541 = vrot.slane %v540, 4
    %v542 = vadd.f32 %v540, %v541
    %v543 = vrot.slane %v542, 2
    %v544 = vadd.f32 %v542, %v543
    %v545 = vrot.slane %v544, 1
    %v546 = vadd.f32 %v544, %v545
    %vm555 = vcmask 1041409
    %v556 = vsel %vm555, %v504, %v497
    %vm557 = vcmask 1042434
    %v558 = vsel %vm557, %v511, %v556
    %vm559 = vcmask 1043459
    %v560 = vsel %vm559, %v518, %v558
    %vm561 = vcmask 1044484
    %v562 = vsel %vm561, %v525, %v560
    %vm563 = vcmask 1045509
    %v564 = vsel %vm563, %v532, %v562
    %vm565 = vcmask 1046534
    %v566 = vsel %vm565, %v539, %v564
    %vm567 = vcmask 1047559
    %v568 = vsel %vm567, %v546, %v566
    %570 = vst.msk [vmem:[#allocation2] sm:$0xff] %vm40, %v568
    // Predicated region
    $region22: #{tpu_custom_call.1} parent=1 // pred_check
      _
    $region23: #{tpu_custom_call.1} parent=1 // pred_check_branch
      %572 = sbr.rel (0) target = $region25
    $region24: #{tpu_custom_call.1} parent=1 // pred_region
      %s574 = ssub.s32 128, 128
      %575 = vsyncadd [#allocation3], %s574
      %s577 = sshll.u32 [#allocation2], 4
      %s578 = int_to_ptr.vmem [resolvable:$true] %s577
      %580 = dma.vmem_to_hbm [thread:$0]  %s578, 128, %s5, [#allocation3]
    $region25: #{tpu_custom_call.1} parent=1 // pred_fallthru
      _
    // Predicated region
    $region26: #{tpu_custom_call.1} parent=1 // pred_check
      _
    $region27: #{tpu_custom_call.1} parent=1 // pred_check_branch
      %582 = sbr.rel (0) target = $region29
    $region28: #{tpu_custom_call.1} parent=1 // pred_region
      %583 = dma.done [#allocation3], 128
    $region29: #{tpu_custom_call.1} parent=1 // pred_fallthru
      _
    %584 = vsyncpa [#allocation3], 1

</llo_original>
